<compile_context>
chip_gen: v7x
topology: tpu7x:2x2x1
jax: 0.10.0
libtpu: 0.0.40
codegen_flags: <defaults>
</compile_context>

<pallas_src>
import jax
import jax.numpy as jnp
from jax.experimental import pallas as pl
from jax.experimental.pallas import tpu as pltpu

SEQ = 8
BATCH = 2
INPUT = 64          # stands in for 512*7*7 at small scale
HIDDEN = 32
NCLASS = 11
TILE_B = 8          # batch rows per recurrent grid point; grow toward 128 (v5e)
                    # / 256 (v6e, v7x) at real scale to feed the MXU.


def _divisor_tile(total, cap, quantum):
    """Largest tile <= cap dividing `total` and a multiple of `quantum`
    (falls back to the full dim, which is always a legal BlockSpec size)."""
    if total <= cap:
        return total
    t = (cap // quantum) * quantum
    while t >= quantum:
        if total % t == 0:
            return t
        t -= quantum
    return total


# --------------------------------------------------------------------------
# Kernel 1: tiled input projection (x2d @ W_ih1^T + b1), f32 accumulation.
# --------------------------------------------------------------------------
def _proj_kernel(x_ref, w_ref, b_ref, o_ref, acc_ref):
    @pl.when(pl.program_id(1) == 0)
    def _():
        acc_ref[...] = jnp.zeros_like(acc_ref)

    acc_ref[...] += jnp.dot(x_ref[...], w_ref[...],
                            preferred_element_type=jnp.float32)

    @pl.when(pl.program_id(1) == pl.num_programs(1) - 1)
    def _():
        o_ref[...] = acc_ref[...] + b_ref[...]


def _input_projection(x2d, w_t, bias, *, tm_cap=256, tk_cap=2048):
    M, K = x2d.shape
    N = w_t.shape[1]
    tm = _divisor_tile(M, tm_cap, 8)
    # TODO(synk): sweep tk per chip at real scale (v5e: 16 MiB scoped VMEM,
    # prefer 2048-4096 bf16; v6e/v7x tolerate larger).
    tk = _divisor_tile(K, tk_cap, 128)
    grid = (M // tm, K // tk)
    isz = x2d.dtype.itemsize
    vmem_bytes = 2 * ((tm * tk + tk * N) * isz + tm * N * 4) + tm * N * 4 + 2 * N * 4
    cost = pl.CostEstimate(
        flops=2 * M * K * N,
        transcendentals=0,
        bytes_accessed=(M * K + K * N) * isz + M * N * 4 + N * 4)
    return pl.pallas_call(
        _proj_kernel,
        out_shape=jax.ShapeDtypeStruct((M, N), jnp.float32),
        grid_spec=pltpu.PrefetchScalarGridSpec(
            num_scalar_prefetch=0,
            grid=grid,
            in_specs=[pl.BlockSpec((tm, tk), lambda i, k: (i, k)),
                      pl.BlockSpec((tk, N), lambda i, k: (k, 0)),
                      pl.BlockSpec((1, N), lambda i, k: (0, 0))],
            out_specs=pl.BlockSpec((tm, N), lambda i, k: (i, 0)),
            scratch_shapes=[pltpu.VMEM((tm, N), jnp.float32)]),
        compiler_params=pltpu.CompilerParams(
            dimension_semantics=("parallel", "arbitrary"),
            vmem_limit_bytes=min(64 * 1024 * 1024,
                                 max(16 * 1024 * 1024, 2 * vmem_bytes))),
        cost_estimate=cost,
    )(x2d, w_t, bias)


# --------------------------------------------------------------------------
# Kernel 2: 2-layer LSTM recurrence + fc1 + softmax, batch-parallel grid.
# --------------------------------------------------------------------------
def _lstm_recurrent_kernel(g1_ref, valid_ref,
                           whh1_ref, wih2_ref, whh2_ref, b2_ref,
                           wfc_ref, bfc_ref, out_ref):
    TB = out_ref.shape[0]
    H = whh1_ref.shape[0]
    seq = g1_ref.shape[0]

    lane = jax.lax.broadcasted_iota(jnp.int32, (TB, 4 * H), 1)
    is_g_gate = (lane >= 2 * H) & (lane < 3 * H)          # hoisted lane mask

    def activate(g):
        # One full-width EUP tanh per gate vector (PyTorch gate order i,f,g,o):
        # sigmoid(x) = 0.5*(tanh(x/2)+1): halve non-g lanes, tanh the whole
        # (TB, 4H) vreg, then apply the 0.5*(.+1) affine on non-g lanes.
        t = jnp.tanh(jnp.where(is_g_gate, g, 0.5 * g))
        act = jnp.where(is_g_gate, t, 0.5 * (t + 1.0))
        # TODO(synk): if the bundle dump shows XLU lane shifts from these
        # H-wide slices on the critical path, restructure the cell update with
        # pltpu.roll to stay (TB, 4H)-wide.
        return (act[:, 0:H], act[:, H:2 * H],
                act[:, 2 * H:3 * H], act[:, 3 * H:4 * H])

    def step(t, carry):
        h1, c1, h2, c2 = carry
        valid = valid_ref[t] != 0                          # (TB, 1), mask hoisted to wrapper

        # ---- layer 1: input projection precomputed; recurrent matmul only ----
        g1 = g1_ref[t] + jnp.dot(h1, whh1_ref[...],
                                 preferred_element_type=jnp.float32)
        i1, f1, gg1, o1 = activate(g1)
        c1n = f1 * c1 + i1 * gg1
        h1n = o1 * jnp.tanh(c1n)
        c1 = jnp.where(valid, c1n, c1)
        h1 = jnp.where(valid, h1n, h1)

        # ---- layer 2: two small MXU ops, no per-step concat / lane assembly ----
        # TODO(synk): nn.LSTM inter-layer dropout(0.5) (training mode) not
        # modeled; eval semantics used.
        g2 = (jnp.dot(h1, wih2_ref[...], preferred_element_type=jnp.float32)
              + jnp.dot(h2, whh2_ref[...], preferred_element_type=jnp.float32)
              + b2_ref[...])
        i2, f2, gg2, o2 = activate(g2)
        c2n = f2 * c2 + i2 * gg2
        h2n = o2 * jnp.tanh(c2n)
        c2 = jnp.where(valid, c2n, c2)
        h2 = jnp.where(valid, h2n, h2)
        return h1, c1, h2, c2

    zeros = jnp.zeros((TB, H), jnp.float32)
    # SEQ=8: full unroll is safe; cap unroll at 2-4 (or pl.loop) if SEQ grows
    # past ~16-32 to avoid vreg-pressure spills on the serial path.
    _, _, h2, _ = jax.lax.fori_loop(0, seq, step, (zeros, zeros, zeros, zeros),
                                    unroll=True)

    # fc1 + softmax; padded class lanes carry a -1e30 bias so the 128-lane
    # softmax equals the true NCLASS-lane softmax (pad lanes underflow to 0).
    logits = (jnp.dot(h2, wfc_ref[...], preferred_element_type=jnp.float32)
              + bfc_ref[...])
    out_ref[...] = jax.nn.softmax(logits, axis=1)


def rnn_classifier_forward(x, lengths, params, *, compute_dtype=jnp.bfloat16):
    (w_ih1, w_hh1, b_ih1, b_hh1,
     w_ih2, w_hh2, b_ih2, b_hh2,
     w_fc, b_fc) = params

    seq, B, inp = x.shape
    H = w_hh1.shape[1]
    Bp = -(-B // TILE_B) * TILE_B          # pad batch to the grid tile
    NCP = 128                              # pad classes to a full lane width

    # Batch padding: padded rows MUST get length 0 -> valid mask all-False ->
    # their states stay frozen at 0 (harmless; sliced off below).
    x_pad = jnp.pad(x, ((0, 0), (0, Bp - B), (0, 0)))
    len_pad = jnp.pad(lengths.astype(jnp.int32), (0, Bp - B),
                      constant_values=0)

    # ---- kernel 1: layer-1 input projection for all timesteps ----
    x2d = x_pad.reshape(seq * Bp, inp).astype(compute_dtype)   # rows (t, b), t-major
    wih1_t = w_ih1.T.astype(compute_dtype)                     # (IN, 4H)
    b1 = (b_ih1 + b_hh1).reshape(1, -1)                        # (1, 4H) f32
    g1 = _input_projection(x2d, wih1_t, b1)                    # (seq*Bp, 4H) f32
    g1 = g1.reshape(seq, Bp, 4 * H)

    # Hoisted validity mask: (seq, Bp, 1) int32, computed once outside the loop.
    valid = (jnp.arange(seq, dtype=jnp.int32)[:, None, None]
             < len_pad[None, :, None]).astype(jnp.int32)

    # Recurrent weights stay f32 (tiny; keeps 1e-4 accuracy vs reference).
    whh1_t = w_hh1.T                                           # (H, 4H)
    wih2_t = w_ih2.T                                           # (H, 4H)
    whh2_t = w_hh2.T                                           # (H, 4H)
    b2 = (b_ih2 + b_hh2).reshape(1, -1)                        # (1, 4H)
    ncls = w_fc.shape[0]
    wfc_t = jnp.pad(w_fc.T, ((0, 0), (0, NCP - ncls)))                    # (H, 128)
    bfc = jnp.pad(b_fc.reshape(1, -1), ((0, 0), (0, NCP - ncls)),
                  constant_values=-1e30)                                  # (1, 128)

    # ---- kernel 2: serial recurrence, batch-parallel grid ----
    nb = Bp // TILE_B

    def _wspec(shape):
        return pl.BlockSpec(shape, lambda j: (0, 0))

    rec_vmem = 2 * (seq * TILE_B * 4 * H * 4 + seq * TILE_B * 4
                    + TILE_B * NCP * 4
                    + (3 * H * 4 * H + 2 * 4 * H + H * NCP + NCP) * 4)
    cost = pl.CostEstimate(
        flops=Bp * (seq * (3 * 2 * H * 4 * H + 40 * H) + 2 * H * NCP),
        transcendentals=Bp * (seq * 2 * (4 * H + H) + NCP),
        bytes_accessed=(seq * Bp * 4 * H * 4 + seq * Bp * 4
                        + (3 * H * 4 * H + H * NCP) * 4 + Bp * NCP * 4))

    y_full = pl.pallas_call(
        _lstm_recurrent_kernel,
        out_shape=jax.ShapeDtypeStruct((Bp, NCP), jnp.float32),
        grid_spec=pltpu.PrefetchScalarGridSpec(
            num_scalar_prefetch=0,
            grid=(nb,),
            in_specs=[
                pl.BlockSpec((seq, TILE_B, 4 * H), lambda j: (0, j, 0)),  # g1
                pl.BlockSpec((seq, TILE_B, 1), lambda j: (0, j, 0)),      # valid
                _wspec(whh1_t.shape), _wspec(wih2_t.shape),
                _wspec(whh2_t.shape), _wspec(b2.shape),
                _wspec(wfc_t.shape), _wspec(bfc.shape),
            ],
            out_specs=pl.BlockSpec((TILE_B, NCP), lambda j: (j, 0))),
        compiler_params=pltpu.CompilerParams(
            dimension_semantics=("parallel",),
            vmem_limit_bytes=min(64 * 1024 * 1024,
                                 max(16 * 1024 * 1024, 2 * rec_vmem))),
        cost_estimate=cost,
    )(g1, valid, whh1_t, wih2_t, whh2_t, b2, wfc_t, bfc)

    return y_full[:B, :ncls]


def _reference(x, lengths, params):
    """Pure-JAX f32 reference of the same math (for sanity checking)."""
    (w_ih1, w_hh1, b_ih1, b_hh1,
     w_ih2, w_hh2, b_ih2, b_hh2,
     w_fc, b_fc) = params
    B = x.shape[1]
    H = HIDDEN
    h1 = c1 = h2 = c2 = jnp.zeros((B, H), jnp.float32)

    def cell(xt, h, c, w_ih, w_hh, b_ih, b_hh):
        g = xt @ w_ih.T + h @ w_hh.T + b_ih + b_hh
        i = jax.nn.sigmoid(g[:, 0 * H:1 * H])
        f = jax.nn.sigmoid(g[:, 1 * H:2 * H])
        gg = jnp.tanh(g[:, 2 * H:3 * H])
        o = jax.nn.sigmoid(g[:, 3 * H:4 * H])
        c_new = f * c + i * gg
        h_new = o * jnp.tanh(c_new)
        return h_new, c_new

    for t in range(x.shape[0]):
        m = (t < lengths).astype(jnp.float32)[:, None]
        h1n, c1n = cell(x[t], h1, c1, w_ih1, w_hh1, b_ih1, b_hh1)
        h1, c1 = m * h1n + (1 - m) * h1, m * c1n + (1 - m) * c1
        h2n, c2n = cell(h1, h2, c2, w_ih2, w_hh2, b_ih2, b_hh2)
        h2, c2 = m * h2n + (1 - m) * h2, m * c2n + (1 - m) * c2

    return jax.nn.softmax(h2 @ w_fc.T + b_fc, axis=1)


if __name__ == "__main__":
    key = jax.random.PRNGKey(0)
    ks = jax.random.split(key, 12)
    s = 1.0 / jnp.sqrt(HIDDEN)

    def u(k, shape):
        return jax.random.uniform(k, shape, jnp.float32, -s, s)

    # PyTorch nn.LSTM parameter shapes (gate order i, f, g, o):
    w_ih1 = u(ks[0], (4 * HIDDEN, INPUT))
    w_hh1 = u(ks[1], (4 * HIDDEN, HIDDEN))
    b_ih1 = u(ks[2], (4 * HIDDEN,))
    b_hh1 = u(ks[3], (4 * HIDDEN,))
    w_ih2 = u(ks[4], (4 * HIDDEN, HIDDEN))
    w_hh2 = u(ks[5], (4 * HIDDEN, HIDDEN))
    b_ih2 = u(ks[6], (4 * HIDDEN,))
    b_hh2 = u(ks[7], (4 * HIDDEN,))
    w_fc = u(ks[8], (NCLASS, HIDDEN))
    b_fc = u(ks[9], (NCLASS,))
    params = (w_ih1, w_hh1, b_ih1, b_hh1,
              w_ih2, w_hh2, b_ih2, b_hh2,
              w_fc, b_fc)

    # Inputs: padded sequence (seq, batch, input), sorted decreasing lengths
    # (pack_padded_sequence default enforce_sorted=True).
    x = jax.random.normal(ks[10], (SEQ, BATCH, INPUT), jnp.float32)
    lengths = jnp.array([8, 5], dtype=jnp.int32)

    y_ref = _reference(x, lengths, params)

    # f32 path: strict numeric check of the kernel structure.
    y32 = jax.block_until_ready(
        rnn_classifier_forward(x, lengths, params, compute_dtype=jnp.float32))
    assert y32.shape == (BATCH, NCLASS)
    assert jnp.allclose(y32, y_ref, atol=1e-4), "f32 kernel mismatch vs reference"

    # bf16 projection path (production dtype for v6e/v7x MXU); loosened tol.
    y16 = jax.block_until_ready(
        rnn_classifier_forward(x, lengths, params, compute_dtype=jnp.bfloat16))
    assert y16.shape == (BATCH, NCLASS)
    assert jnp.allclose(y16, y_ref, atol=2e-2), "bf16 kernel mismatch vs reference"
    assert jnp.allclose(jnp.sum(y16, axis=1), 1.0, atol=1e-4)

    print("KERNEL_OK")
</pallas_src>

<mosaic_0001>
module attributes {stable_mosaic.version = 11 : i64} {
  func.func @_proj_kernel(%arg0: i32, %arg1: i32, %arg2: memref<64x64xf32, #tpu.memory_space<vmem>>, %arg3: memref<64x128xf32, #tpu.memory_space<vmem>>, %arg4: memref<1x128xf32, #tpu.memory_space<vmem>>, %arg5: memref<64x128xf32, #tpu.memory_space<vmem>>, %arg6: memref<64x128xf32, #tpu.memory_space<vmem>>) attributes {dimension_semantics = [#tpu.dimension_semantics<parallel>, #tpu.dimension_semantics<arbitrary>], iteration_bounds = array<i64: 1, 1>, scalar_prefetch = 0 : i64, scratch_operands = 1 : i64, tpu.core_type = #tpu.core_type<tc>, window_params = [{transform_indices = @transform_0, window_bounds = array<i64: 64, 64>}, {transform_indices = @transform_1, window_bounds = array<i64: 64, 128>}, {pipeline_mode = #tpu.pipeline_mode<synchronous>, transform_indices = @transform_2, window_bounds = array<i64: 1, 128>}, {transform_indices = @transform_3, window_bounds = array<i64: 64, 128>}]} {
    %c0_i32 = arith.constant 0 : i32
    %0 = arith.cmpi eq, %arg1, %c0_i32 : i32
    %1 = arith.extui %0 : i1 to i32
    %c0_i32_0 = arith.constant 0 : i32
    %2 = arith.cmpi ne, %1, %c0_i32_0 : i32
    scf.if %2 {
      %cst_10 = arith.constant 0.000000e+00 : f32
      %12 = vector.broadcast %cst_10 : f32 to vector<64x128xf32>
      %c0_11 = arith.constant 0 : index
      %c0_12 = arith.constant 0 : index
      %13 = vector.load %arg6[%c0_11, %c0_12] : memref<64x128xf32, #tpu.memory_space<vmem>>, vector<64x128xf32>
      tpu.vector_store %arg6[%c0_11, %c0_12], %12 {strides = array<i32>} : memref<64x128xf32, #tpu.memory_space<vmem>>, vector<64x128xf32>,
    } else {
    }
    %c0 = arith.constant 0 : index
    %c0_1 = arith.constant 0 : index
    %3 = vector.load %arg6[%c0, %c0_1] : memref<64x128xf32, #tpu.memory_space<vmem>>, vector<64x128xf32>
    %c0_2 = arith.constant 0 : index
    %c0_3 = arith.constant 0 : index
    %4 = vector.load %arg2[%c0_2, %c0_3] : memref<64x64xf32, #tpu.memory_space<vmem>>, vector<64x64xf32>
    %c0_4 = arith.constant 0 : index
    %c0_5 = arith.constant 0 : index
    %5 = vector.load %arg3[%c0_4, %c0_5] : memref<64x128xf32, #tpu.memory_space<vmem>>, vector<64x128xf32>
    %cst = arith.constant dense<0.000000e+00> : vector<64x128xf32>
    %6 = tpu.matmul %4, %5, %cst {dimension_numbers = #tpu.dot_dimension_numbers<[1], [0], [0], [1], [0, 0, 1, 1], [], []>} : vector<64x64xf32>, vector<64x128xf32>, vector<64x128xf32> -> vector<64x128xf32>
    %7 = arith.addf %3, %6 : vector<64x128xf32>
    %c0_6 = arith.constant 0 : index
    %c0_7 = arith.constant 0 : index
    %8 = vector.load %arg6[%c0_6, %c0_7] : memref<64x128xf32, #tpu.memory_space<vmem>>, vector<64x128xf32>
    tpu.vector_store %arg6[%c0_6, %c0_7], %7 {strides = array<i32>} : memref<64x128xf32, #tpu.memory_space<vmem>>, vector<64x128xf32>,
    %c0_i32_8 = arith.constant 0 : i32
    %9 = arith.cmpi eq, %arg1, %c0_i32_8 : i32
    %10 = arith.extui %9 : i1 to i32
    %c0_i32_9 = arith.constant 0 : i32
    %11 = arith.cmpi ne, %10, %c0_i32_9 : i32
    scf.if %11 {
      %c0_10 = arith.constant 0 : index
      %c0_11 = arith.constant 0 : index
      %12 = vector.load %arg6[%c0_10, %c0_11] : memref<64x128xf32, #tpu.memory_space<vmem>>, vector<64x128xf32>
      %c0_12 = arith.constant 0 : index
      %c0_13 = arith.constant 0 : index
      %13 = vector.load %arg4[%c0_12, %c0_13] : memref<1x128xf32, #tpu.memory_space<vmem>>, vector<1x128xf32>
      %14 = vector.broadcast %13 : vector<1x128xf32> to vector<64x128xf32>
      %15 = arith.addf %12, %14 : vector<64x128xf32>
      %c0_14 = arith.constant 0 : index
      %c0_15 = arith.constant 0 : index
      %16 = vector.load %arg5[%c0_14, %c0_15] : memref<64x128xf32, #tpu.memory_space<vmem>>, vector<64x128xf32>
      tpu.vector_store %arg5[%c0_14, %c0_15], %15 {strides = array<i32>} : memref<64x128xf32, #tpu.memory_space<vmem>>, vector<64x128xf32>,
    } else {
    }
    return
  }
  func.func @transform_0(%arg0: i32, %arg1: i32) -> (i32, i32) {
    %c0_i32 = arith.constant 0 : i32
    return %arg0, %arg1 : i32, i32
  }
  func.func @transform_1(%arg0: i32, %arg1: i32) -> (i32, i32) {
    %c0_i32 = arith.constant 0 : i32
    %c0_i32_0 = arith.constant 0 : i32
    return %arg1, %c0_i32 : i32, i32
  }
  func.func @transform_2(%arg0: i32, %arg1: i32) -> (i32, i32) {
    %c0_i32 = arith.constant 0 : i32
    %c0_i32_0 = arith.constant 0 : i32
    %c0_i32_1 = arith.constant 0 : i32
    return %c0_i32, %c0_i32_0 : i32, i32
  }
  func.func @transform_3(%arg0: i32, %arg1: i32) -> (i32, i32) {
    %c0_i32 = arith.constant 0 : i32
    %c0_i32_0 = arith.constant 0 : i32
    return %arg0, %c0_i32 : i32, i32
  }
}

</mosaic_0001>

<llo_original>
// kernel: tpu_custom_call.1
$region0: #{tpu_custom_call.1}
  #allocation0 [shape = 'u32[]', space=smem, size = 0x4, offset = 0x4, fixed_abs, tag = 'smem constant byte address 0x4 - core index']
  #allocation1 [shape = 'u32[144,128]{1,0:T(1,128)}', space=vmem, size = 0x12000, scoped, tag = 'internal scratch']
  #allocation2 [shape = 'f32[64,128]{1,0:T(8,128)}', space=vmem, size = 0x8000, scoped, tag = 'scratch operand']
  %s0 = inlined_call_operand.hbm [shape: f32[64,64], index: 0, kind: input, shape index: {}]
  %s1 = inlined_call_operand.hbm [shape: f32[64,128], index: 1, kind: input, shape index: {}]
  %s2 = inlined_call_operand.vmem [shape: f32[1,128], index: 2, kind: input, shape index: {}]
  %s3 = inlined_call_operand.hbm [shape: f32[64,128], index: 3, kind: output, shape index: {}]
  %s4 = sld [smem:[#allocation0]]
  $region38: #{tpu_custom_call.1} parent=0
    _
  %s6 = ssub.s32 1, %s4
  %s7 = scalar_select 0, %s6, %s4
  $region1: #{tpu_custom_call.1} parent=0
    #allocation3 [shape = 'u8[32768]{0}', space=vmem, size = 0x8000, scoped, tag = 'input window, operand 0, single buffered']
    #allocation4 [shape = 's32[1]{0}', space=sflag, size = 0x4, scoped, tag = 'scoped memory for tpu_custom_call.1']
    #allocation5 [shape = 's32[1]{0}', space=sflag, size = 0x4, scoped, tag = 'scoped memory for tpu_custom_call.1']
    #allocation6 [shape = 'u8[32768]{0}', space=vmem, size = 0x8000, scoped, tag = 'input window, operand 1, single buffered']
    #allocation7 [shape = 's32[1]{0}', space=sflag, size = 0x4, scoped, tag = 'scoped memory for tpu_custom_call.1']
    #allocation8 [shape = 'u8[32768]{0}', space=vmem, size = 0x8000, scoped, tag = 'output window, operand 0, single buffered']
    %8 = vsyncpa [#allocation4], 0
    %9 = vsyncpa [#allocation7], 0
    %10 = vsyncpa [#allocation5], 0
    // Predicated region
    $region2: #{tpu_custom_call.1} parent=1 // pred_check
      _
    $region3: #{tpu_custom_call.1} parent=1 // pred_check_branch
      %12 = sbr.rel (0) target = $region5
    $region4: #{tpu_custom_call.1} parent=1 // pred_region
      %s14 = ssub.s32 1024, 1024
      %15 = vsyncadd [#allocation4], %s14
      %s16 = sshll.u32 [#allocation3], 4
      %s17 = int_to_ptr.vmem [resolvable:$true] %s16
      %22 = dma.hbm_to_vmem [thread:$0]  %s0, 1024, %s17, [#allocation4], 128, 128, 8
    $region5: #{tpu_custom_call.1} parent=1 // pred_fallthru
      _
    // Predicated region
    $region6: #{tpu_custom_call.1} parent=1 // pred_check
      _
    $region7: #{tpu_custom_call.1} parent=1 // pred_check_branch
      %24 = sbr.rel (0) target = $region9
    $region8: #{tpu_custom_call.1} parent=1 // pred_region
      %s26 = ssub.s32 1024, 1024
      %27 = vsyncadd [#allocation7], %s26
      %s28 = sshll.u32 [#allocation6], 4
      %s29 = int_to_ptr.vmem [resolvable:$true] %s28
      %34 = dma.hbm_to_vmem [thread:$0]  %s1, 1024, %s29, [#allocation7], 128, 128, 8
    $region9: #{tpu_custom_call.1} parent=1 // pred_fallthru
      _
    // Predicated region
    $region10: #{tpu_custom_call.1} parent=1 // pred_check
      _
    $region11: #{tpu_custom_call.1} parent=1 // pred_check_branch
      %36 = sbr.rel (0) target = $region13
    $region12: #{tpu_custom_call.1} parent=1 // pred_region
      _
    $region13: #{tpu_custom_call.1} parent=1 // pred_fallthru
      _
    // Predicated region
    $region14: #{tpu_custom_call.1} parent=1 // pred_check
      _
    $region15: #{tpu_custom_call.1} parent=1 // pred_check_branch
      %38 = sbr.rel (0) target = $region17
    $region16: #{tpu_custom_call.1} parent=1 // pred_region
      %39 = dma.done [#allocation4], 1024
    $region17: #{tpu_custom_call.1} parent=1 // pred_fallthru
      _
    // Predicated region
    $region18: #{tpu_custom_call.1} parent=1 // pred_check
      _
    $region19: #{tpu_custom_call.1} parent=1 // pred_check_branch
      %41 = sbr.rel (0) target = $region21
    $region20: #{tpu_custom_call.1} parent=1 // pred_region
      %42 = dma.done [#allocation7], 1024
    $region21: #{tpu_custom_call.1} parent=1 // pred_fallthru
      _
    %p43 = scmp.eq.s32.totalorder 0, 0
    // Predicated region
    $region22: #{tpu_custom_call.1} parent=1 // pred_check
      %p44 = pneg %p43
    $region23: #{tpu_custom_call.1} parent=1 // pred_check_branch
      %46 = sbr.rel (%p44) target = $region25
    $region24: #{tpu_custom_call.1} parent=1 // pred_region
      %47 = vst [vmem:[#allocation2] sm:$0xff] 0.0
      %48 = vst [vmem:[#allocation2 + $0x8] sm:$0xff] 0.0
      %49 = vst [vmem:[#allocation2 + $0x10] sm:$0xff] 0.0
      %50 = vst [vmem:[#allocation2 + $0x18] sm:$0xff] 0.0
      %51 = vst [vmem:[#allocation2 + $0x20] sm:$0xff] 0.0
      %52 = vst [vmem:[#allocation2 + $0x28] sm:$0xff] 0.0
      %53 = vst [vmem:[#allocation2 + $0x30] sm:$0xff] 0.0
      %54 = vst [vmem:[#allocation2 + $0x38] sm:$0xff] 0.0
    $region25: #{tpu_custom_call.1} parent=1 // pred_fallthru
      _
    %v55 = vld [vmem:[#allocation2] sm:$0xff]
    %v56 = vld [vmem:[#allocation2 + $0x8] sm:$0xff]
    %v57 = vld [vmem:[#allocation2 + $0x10] sm:$0xff]
    %v58 = vld [vmem:[#allocation2 + $0x18] sm:$0xff]
    %v59 = vld [vmem:[#allocation2 + $0x20] sm:$0xff]
    %v60 = vld [vmem:[#allocation2 + $0x28] sm:$0xff]
    %v61 = vld [vmem:[#allocation2 + $0x30] sm:$0xff]
    %v62 = vld [vmem:[#allocation2 + $0x38] sm:$0xff]
    %v63 = vld [vmem:[#allocation3] sm:$0xff]
    %v64 = vld [vmem:[#allocation3 + $0x8] sm:$0xff]
    %v65 = vld [vmem:[#allocation3 + $0x10] sm:$0xff]
    %v66 = vld [vmem:[#allocation3 + $0x18] sm:$0xff]
    %v67 = vld [vmem:[#allocation3 + $0x20] sm:$0xff]
    %v68 = vld [vmem:[#allocation3 + $0x28] sm:$0xff]
    %v69 = vld [vmem:[#allocation3 + $0x30] sm:$0xff]
    %v70 = vld [vmem:[#allocation3 + $0x38] sm:$0xff]
    %v71 = vld [vmem:[#allocation6] sm:$0xff]
    %v72 = vld [vmem:[#allocation6 + $0x8] sm:$0xff]
    %v73 = vld [vmem:[#allocation6 + $0x10] sm:$0xff]
    %v74 = vld [vmem:[#allocation6 + $0x18] sm:$0xff]
    %v75 = vld [vmem:[#allocation6 + $0x20] sm:$0xff]
    %v76 = vld [vmem:[#allocation6 + $0x28] sm:$0xff]
    %v77 = vld [vmem:[#allocation6 + $0x30] sm:$0xff]
    %v78 = vld [vmem:[#allocation6 + $0x38] sm:$0xff]
    %vm79 = vcmask 523264
    %v81 = vsel %vm79, %v63, 0
    %v84 = vsel %vm79, %v64, 0
    %v87 = vsel %vm79, %v65, 0
    %v90 = vsel %vm79, %v66, 0
    %v93 = vsel %vm79, %v67, 0
    %v96 = vsel %vm79, %v68, 0
    %v99 = vsel %vm79, %v69, 0
    %v102 = vsel %vm79, %v70, 0
    %104 = vmatprep.subr.mxu0 0.0
    %105 = vmatpush1.msra.mxu0 %v71
    %106 = vmatprep.subr.mxu0 0.0
    %107 = vmatpush1.msra.mxu0 %v72
    %108 = vmatprep.subr.mxu0 0.0
    %109 = vmatpush1.msra.mxu0 %v73
    %110 = vmatprep.subr.mxu0 0.0
    %111 = vmatpush1.msra.mxu0 %v74
    %112 = vmatprep.subr.mxu0 0.0
    %113 = vmatpush1.msra.mxu0 %v75
    %114 = vmatprep.subr.mxu0 0.0
    %115 = vmatpush1.msra.mxu0 %v76
    %116 = vmatprep.subr.mxu0 0.0
    %117 = vmatpush1.msra.mxu0 %v77
    %118 = vmatprep.subr.mxu0 0.0
    %119 = vmatpush1.msra.mxu0 %v78
    %120 = vmatprep.subr.mxu0 0.0
    %121 = vmatpush1.msra.mxu0 0.0
    %122 = vmatprep.subr.mxu0 0.0
    %123 = vmatpush1.msra.mxu0 0.0
    %124 = vmatprep.subr.mxu0 0.0
    %125 = vmatpush1.msra.mxu0 0.0
    %126 = vmatprep.subr.mxu0 0.0
    %127 = vmatpush1.msra.mxu0 0.0
    %128 = vmatprep.subr.mxu0 0.0
    %129 = vmatpush1.msra.mxu0 0.0
    %130 = vmatprep.subr.mxu0 0.0
    %131 = vmatpush1.msra.mxu0 0.0
    %132 = vmatprep.subr.mxu0 0.0
    %133 = vmatpush1.msra.mxu0 0.0
    %134 = vmatprep.subr.mxu0 0.0
    %135 = vmatpush1.msra.mxu0 0.0
    %136 = vmatprep.subr.mxu0 0.0
    %137 = vmatpush1.msra.mxu0 0.0
    %138 = vmatprep.subr.mxu0 0.0
    %139 = vmatpush1.msra.mxu0 0.0
    %140 = vmatprep.subr.mxu0 0.0
    %141 = vmatpush1.msra.mxu0 0.0
    %142 = vmatprep.subr.mxu0 0.0
    %143 = vmatpush1.msra.mxu0 0.0
    %144 = vmatprep.subr.mxu0 0.0
    %145 = vmatpush1.msra.mxu0 0.0
    %146 = vmatprep.subr.mxu0 0.0
    %147 = vmatpush1.msra.mxu0 0.0
    %148 = vmatprep.subr.mxu0 0.0
    %149 = vmatpush1.msra.mxu0 0.0
    %150 = vmatprep.subr.mxu0 0.0
    %151 = vmatpush1.msra.mxu0 0.0
    %152 = vmatprep.subr.mxu0 0.0
    %153 = vmatpush1.msra.mxu0 0.0
    %154 = vmatprep.subr.mxu0 0.0
    %155 = vmatpush1.msra.mxu0 0.0
    %156 = vmatprep.subr.mxu0 0.0
    %157 = vmatpush1.msra.mxu0 0.0
    %158 = vmatprep.subr.mxu0 0.0
    %159 = vmatpush1.msra.mxu0 0.0
    %160 = vmatprep.subr.mxu0 0.0
    %161 = vmatpush1.msra.mxu0 0.0
    %162 = vmatprep.subr.mxu0 0.0
    %163 = vmatpush1.msra.mxu0 0.0
    %164 = vmatprep.subr.mxu0 0.0
    %165 = vmatpush1.msra.mxu0 0.0
    %166 = vmatprep.subr.mxu0 0.0
    %167 = vmatpush1.msra.mxu0 0.0
    %168 = vmatprep.mubr.f32.mxu0 0.0
    %169 = vmatmul.mubr.f32.gmra.mrb[0].mxu0 %v81
    %v170 = vpop.f32.mrb[0].mxu0
    %v171 = vadd.f32 0.0, %v170
    %v172 = vpop.f32.mrb[0].mxu0
    %173 = vmatprep.mubr.f32.mxu0 0.0
    %174 = vmatmul.mubr.f32.gmra.mrb[0].mxu0 %v84
    %v175 = vpop.f32.mrb[0].mxu0
    %v176 = vadd.f32 0.0, %v175
    %v177 = vpop.f32.mrb[0].mxu0
    %178 = vmatprep.mubr.f32.mxu0 0.0
    %179 = vmatmul.mubr.f32.gmra.mrb[0].mxu0 %v87
    %v180 = vpop.f32.mrb[0].mxu0
    %v181 = vadd.f32 0.0, %v180
    %v182 = vpop.f32.mrb[0].mxu0
    %183 = vmatprep.mubr.f32.mxu0 0.0
    %184 = vmatmul.mubr.f32.gmra.mrb[0].mxu0 %v90
    %v185 = vpop.f32.mrb[0].mxu0
    %v186 = vadd.f32 0.0, %v185
    %v187 = vpop.f32.mrb[0].mxu0
    %188 = vmatprep.mubr.f32.mxu0 0.0
    %189 = vmatmul.mubr.f32.gmra.mrb[0].mxu0 %v93
    %v190 = vpop.f32.mrb[0].mxu0
    %v191 = vadd.f32 0.0, %v190
    %v192 = vpop.f32.mrb[0].mxu0
    %193 = vmatprep.mubr.f32.mxu0 0.0
    %194 = vmatmul.mubr.f32.gmra.mrb[0].mxu0 %v96
    %v195 = vpop.f32.mrb[0].mxu0
    %v196 = vadd.f32 0.0, %v195
    %v197 = vpop.f32.mrb[0].mxu0
    %198 = vmatprep.mubr.f32.mxu0 0.0
    %199 = vmatmul.mubr.f32.gmra.mrb[0].mxu0 %v99
    %v200 = vpop.f32.mrb[0].mxu0
    %v201 = vadd.f32 0.0, %v200
    %v202 = vpop.f32.mrb[0].mxu0
    %203 = vmatprep.mubr.f32.mxu0 0.0
    %204 = vmatmul.mubr.f32.gmra.mrb[0].mxu0 %v102
    %v205 = vpop.f32.mrb[0].mxu0
    %v206 = vadd.f32 0.0, %v205
    %v207 = vpop.f32.mrb[0].mxu0
    %208 = vdwg.mxu0
    %v209 = vadd.f32 %v55, %v171
    %v210 = vadd.f32 %v56, %v176
    %v211 = vadd.f32 %v57, %v181
    %v212 = vadd.f32 %v58, %v186
    %v213 = vadd.f32 %v59, %v191
    %v214 = vadd.f32 %v60, %v196
    %v215 = vadd.f32 %v61, %v201
    %v216 = vadd.f32 %v62, %v206
    %217 = vst [vmem:[#allocation2] sm:$0xff] %v209
    %218 = vst [vmem:[#allocation2 + $0x8] sm:$0xff] %v210
    %219 = vst [vmem:[#allocation2 + $0x10] sm:$0xff] %v211
    %220 = vst [vmem:[#allocation2 + $0x18] sm:$0xff] %v212
    %221 = vst [vmem:[#allocation2 + $0x20] sm:$0xff] %v213
    %222 = vst [vmem:[#allocation2 + $0x28] sm:$0xff] %v214
    %223 = vst [vmem:[#allocation2 + $0x30] sm:$0xff] %v215
    %224 = vst [vmem:[#allocation2 + $0x38] sm:$0xff] %v216
    // Predicated region
    $region26: #{tpu_custom_call.1} parent=1 // pred_check
      %p225 = pneg %p43
    $region27: #{tpu_custom_call.1} parent=1 // pred_check_branch
      %227 = sbr.rel (%p225) target = $region29
    $region28: #{tpu_custom_call.1} parent=1 // pred_region
      %v228 = vld [vmem:[#allocation2] sm:$0xff]
      %v229 = vld [vmem:[#allocation2 + $0x8] sm:$0xff]
      %v230 = vld [vmem:[#allocation2 + $0x10] sm:$0xff]
      %v231 = vld [vmem:[#allocation2 + $0x18] sm:$0xff]
      %v232 = vld [vmem:[#allocation2 + $0x20] sm:$0xff]
      %v233 = vld [vmem:[#allocation2 + $0x28] sm:$0xff]
      %v234 = vld [vmem:[#allocation2 + $0x30] sm:$0xff]
      %v235 = vld [vmem:[#allocation2 + $0x38] sm:$0xff]
      %v236 = vld [vmem:[%s2] sm:$0x1]
      %v238 = vlaneseq
      %v239 = vshrl.u32 %v238, 7
      %v240 = vsub.s32 0, %v239
      %v241 = vrot.slane %v236, %v240
      %v243 = vadd.f32 %v228, %v241
      %v244 = vadd.f32 %v229, %v241
      %v245 = vadd.f32 %v230, %v241
      %v246 = vadd.f32 %v231, %v241
      %v247 = vadd.f32 %v232, %v241
      %v248 = vadd.f32 %v233, %v241
      %v249 = vadd.f32 %v234, %v241
      %v250 = vadd.f32 %v235, %v241
      %251 = vst [vmem:[#allocation8] sm:$0xff] %v243
      %252 = vst [vmem:[#allocation8 + $0x8] sm:$0xff] %v244
      %253 = vst [vmem:[#allocation8 + $0x10] sm:$0xff] %v245
      %254 = vst [vmem:[#allocation8 + $0x18] sm:$0xff] %v246
      %255 = vst [vmem:[#allocation8 + $0x20] sm:$0xff] %v247
      %256 = vst [vmem:[#allocation8 + $0x28] sm:$0xff] %v248
      %257 = vst [vmem:[#allocation8 + $0x30] sm:$0xff] %v249
      %258 = vst [vmem:[#allocation8 + $0x38] sm:$0xff] %v250
    $region29: #{tpu_custom_call.1} parent=1 // pred_fallthru
      _
    // Predicated region
    $region30: #{tpu_custom_call.1} parent=1 // pred_check
      _
    $region31: #{tpu_custom_call.1} parent=1 // pred_check_branch
      %260 = sbr.rel (0) target = $region33
    $region32: #{tpu_custom_call.1} parent=1 // pred_region
      %s262 = ssub.s32 1024, 1024
      %263 = vsyncadd [#allocation5], %s262
      %s264 = sshll.u32 [#allocation8], 4
      %s265 = int_to_ptr.vmem [resolvable:$true] %s264
      %270 = dma.vmem_to_hbm [thread:$0]  %s265, 1024, %s3, [#allocation5], 128, 128, 8
    $region33: #{tpu_custom_call.1} parent=1 // pred_fallthru
      _
    // Predicated region
    $region34: #{tpu_custom_call.1} parent=1 // pred_check
      _
    $region35: #{tpu_custom_call.1} parent=1 // pred_check_branch
      %272 = sbr.rel (0) target = $region37
    $region36: #{tpu_custom_call.1} parent=1 // pred_region
      %273 = dma.done [#allocation5], 1024
    $region37: #{tpu_custom_call.1} parent=1 // pred_fallthru
      _
    %274 = vsyncpa [#allocation4], 1
    %275 = vsyncpa [#allocation7], 1
    %276 = vsyncpa [#allocation5], 1

</llo_original>
